<compile_context>
chip_gen: v5e
topology: v5e:2x2
jax: 0.10.0
libtpu: 0.0.40
codegen_flags: <defaults>
</compile_context>

<pallas_src>
import functools

import jax
import jax.numpy as jnp
from jax import lax
from jax.experimental import pallas as pl
from jax.experimental.pallas import tpu as pltpu


def _round_up(x, m):
    return ((x + m - 1) // m) * m


def _cdiv(a, b):
    return (a + b - 1) // b


# --------------------------- dropout PRNG (hash) ---------------------------- #

def _hash_u32(x):
    """'lowbias32' integer finalizer; pure uint32 elementwise ops."""
    x = x ^ (x >> jnp.uint32(16))
    x = x * jnp.uint32(0x7FEB352D)
    x = x ^ (x >> jnp.uint32(15))
    x = x * jnp.uint32(0x846CA68B)
    x = x ^ (x >> jnp.uint32(16))
    return x


def _keep_mask(shape, row0, col0, seed, threshold):
    """Counter-based keep mask: depends only on global (row, col, seed)."""
    rows = (row0 + lax.broadcasted_iota(jnp.int32, shape, 0)).astype(jnp.uint32)
    cols = (col0 + lax.broadcasted_iota(jnp.int32, shape, 1)).astype(jnp.uint32)
    seed_u = jnp.asarray(seed).astype(jnp.uint32)
    key = ((rows * jnp.uint32(0x9E3779B1))
           ^ (cols * jnp.uint32(0x85EBCA77))
           ^ (seed_u * jnp.uint32(0xC2B2AE3D) + jnp.uint32(0x27D4EB2F)))
    return _hash_u32(key) >= jnp.uint32(threshold)      # P(keep) = 1 - p


def _mask_k_tail(xv, k, tk, k_valid):
    """Zero columns past the valid K extent (x is not padded in HBM)."""
    if k_valid == 0:          # static: K divides the tile evenly, nothing to do
        return xv
    col = k * tk + lax.broadcasted_iota(jnp.int32, xv.shape, 1)
    return jnp.where(col < k_valid, xv, jnp.zeros_like(xv))


# ------------------------------- kernels ------------------------------------ #

def _linear_kernel(x_ref, w_ref, b_ref, o_ref, acc_ref, *, tk, k_valid):
    """Eval mode: y = x @ W + b (dropout is identity)."""
    k = pl.program_id(2)

    @pl.when(k == 0)
    def _():
        acc_ref[...] = jnp.zeros_like(acc_ref)

    xv = _mask_k_tail(x_ref[...], k, tk, k_valid)
    acc_ref[...] += jnp.dot(xv, w_ref[...], preferred_element_type=jnp.float32)

    @pl.when(k == pl.num_programs(2) - 1)
    def _():
        o_ref[...] = (acc_ref[...] + b_ref[...]).astype(o_ref.dtype)


def _dropout_linear_kernel(seed_ref, x_ref, w_ref, b_ref, o_ref, acc_ref,
                           *, threshold, scale, tm, tk, k_valid):
    """Training mode, no cache: recompute the keep-mask every grid step."""
    i = pl.program_id(0)
    k = pl.program_id(2)

    @pl.when(k == 0)
    def _():
        acc_ref[...] = jnp.zeros_like(acc_ref)

    xv = _mask_k_tail(x_ref[...], k, tk, k_valid)
    keep = _keep_mask(xv.shape, i * tm, k * tk, seed_ref[0], threshold)
    xm = jnp.where(keep, xv, jnp.zeros_like(xv))
    acc_ref[...] += jnp.dot(xm, w_ref[...], preferred_element_type=jnp.float32)

    @pl.when(k == pl.num_programs(2) - 1)
    def _():
        o_ref[...] = (acc_ref[...] * jnp.float32(scale)
                      + b_ref[...]).astype(o_ref.dtype)


def _dropout_linear_kernel_cached(seed_ref, x_ref, w_ref, b_ref, o_ref,
                                  acc_ref, xm_ref,
                                  *, threshold, scale, tm, tk, k_valid):
    """Training mode: masked x computed once per (i, k) on j == 0 and cached in
    VMEM so mask generation is not repeated for every output-column block."""
    i = pl.program_id(0)
    j = pl.program_id(1)
    k = pl.program_id(2)

    @pl.when(k == 0)
    def _():
        acc_ref[...] = jnp.zeros_like(acc_ref)

    @pl.when(j == 0)
    def _():
        xv = _mask_k_tail(x_ref[...], k, tk, k_valid)
        keep = _keep_mask(xv.shape, i * tm, k * tk, seed_ref[0], threshold)
        xm_ref[k] = jnp.where(keep, xv, jnp.zeros_like(xv))

    acc_ref[...] += jnp.dot(xm_ref[k], w_ref[...],
                            preferred_element_type=jnp.float32)

    @pl.when(k == pl.num_programs(2) - 1)
    def _():
        o_ref[...] = (acc_ref[...] * jnp.float32(scale)
                      + b_ref[...]).astype(o_ref.dtype)


# ------------------------------- wrapper ------------------------------------ #

def _vmem_budget_bytes():
    """Per-generation scoped-VMEM budget with headroom (fallback: v7x 64 MiB)."""
    cap = 64 * 1024 * 1024
    try:
        cap = int(pltpu.get_tpu_info().vmem_capacity_bytes)
    except Exception:
        pass
    return max(min((cap * 3) // 4, cap - 16 * 1024 * 1024), 16 * 1024 * 1024)


def contrastive_ot_forward(x, w, b, *, p=0.5, training=False, seed=0,
                           tm=None, tn=None, tk=None):
    """ContrastiveOT forward: dropout(x, p) -> Linear(Din, Dout).

    x: (B, S, Din); w: (Din, Dout) (transpose of torch's (out, in)); b: (Dout,).
    Returns (B, S, Dout).
    """
    B, S, Din = x.shape
    Dout = w.shape[1]
    M = B * S
    dtype = x.dtype
    itm = jnp.dtype(dtype).itemsize

    if training and p >= 1.0:        # every activation dropped -> bias only
        return jnp.broadcast_to(b.reshape(1, 1, Dout), (B, S, Dout)).astype(dtype)
    use_dropout = bool(training) and p > 0.0

    # dtype-aware sublane packing and MXU-intensity-driven tile defaults.
    sub = {4: 8, 2: 16, 1: 32}.get(itm, 8)
    tm = (1024 if itm <= 2 else 512) if tm is None else _round_up(tm, sub)
    tn = (1024 if itm <= 2 else 512) if tn is None else _round_up(tn, 128)
    tk = (512 if itm <= 2 else 256) if tk is None else _round_up(tk, 128)

    tm_e = min(tm, _round_up(M, sub))
    tk_e = min(tk, _round_up(Din, 128))
    tn_e = min(tn, _round_up(Dout, 128))
    Np = _round_up(Dout, 128)        # lane-dense output columns

    # v7x has 2 TensorCores: make sure a 'parallel' axis has >= 2 blocks when
    # the problem is big enough to split.
    if _cdiv(M, tm_e) == 1 and _cdiv(Np, tn_e) == 1 and Np >= 256:
        tn_e = _round_up(_cdiv(Np, 2), 128)

    budget = _vmem_budget_bytes()

    def _base_bytes():
        # double-buffered x/w/out tiles + f32 accumulator
        return (itm * (2 * tm_e * tk_e + 2 * tk_e * tn_e + 2 * tm_e * tn_e)
                + 4 * tm_e * tn_e)

    # Shrink tiles (keeping hardware alignment) if the working set would not fit.
    while _base_bytes() > budget and (tk_e > 128 or tn_e > 128 or tm_e > sub):
        if tk_e > 128:
            tk_e = max(128, _round_up(tk_e // 2, 128))
        elif tn_e > 128:
            tn_e = max(128, _round_up(tn_e // 2, 128))
        else:
            tm_e = max(sub, _round_up(tm_e // 2, sub))

    gm, gn, gk = _cdiv(M, tm_e), _cdiv(Np, tn_e), _cdiv(Din, tk_e)
    Kp = gk * tk_e
    k_valid = 0 if Din % tk_e == 0 else Din     # 0 => no in-kernel K-tail mask

    # Cache the masked x strip across the j (output-column) axis when it pays
    # off and fits the VMEM budget.
    cache_bytes = gk * tm_e * tk_e * itm
    use_cache = use_dropout and gn > 1 and (_base_bytes() + cache_bytes) <= budget

    # x stays unpadded (no extra HBM round trip of the activations); only the
    # small W / b get a one-time zero pad to block-aligned / lane-dense shapes.
    x2 = x.reshape(M, Din)
    w2 = w if (Kp, Np) == (Din, Dout) else jnp.pad(
        w, ((0, Kp - Din), (0, Np - Dout)))
    b2 = b.reshape(1, Dout)
    if Np != Dout:
        b2 = jnp.pad(b2, ((0, 0), (0, Np - Dout)))

    grid = (gm, gn, gk)
    x_spec = pl.BlockSpec((tm_e, tk_e), lambda i, j, k, *_: (i, k))
    w_spec = pl.BlockSpec((tk_e, tn_e), lambda i, j, k, *_: (k, j))
    b_spec = pl.BlockSpec((1, tn_e), lambda i, j, k, *_: (0, j))
    o_spec = pl.BlockSpec((tm_e, tn_e), lambda i, j, k, *_: (i, j))
    out_shape = jax.ShapeDtypeStruct((M, Np), dtype)

    # With the mask cache the j axis must stay on one core (j == 0 fills it),
    # so only mark it 'parallel' when there is no cache dependency.
    dims = ("parallel", "arbitrary" if use_cache else "parallel", "arbitrary")
    cparams = pltpu.CompilerParams(dimension_semantics=dims,
                                   vmem_limit_bytes=int(budget))

    if not use_dropout:
        kernel = functools.partial(_linear_kernel, tk=tk_e, k_valid=k_valid)
        y2 = pl.pallas_call(
            kernel,
            out_shape=out_shape,
            grid_spec=pltpu.PrefetchScalarGridSpec(
                num_scalar_prefetch=0,
                grid=grid,
                in_specs=[x_spec, w_spec, b_spec],
                out_specs=o_spec,
                scratch_shapes=[pltpu.VMEM((tm_e, tn_e), jnp.float32)]),
            compiler_params=cparams,
        )(x2, w2, b2)
    else:
        threshold = min(int(round(p * float(1 << 32))), (1 << 32) - 1)
        scale = 1.0 / (1.0 - p)
        seed_arr = jnp.array([seed], dtype=jnp.int32)
        scratch = [pltpu.VMEM((tm_e, tn_e), jnp.float32)]
        if use_cache:
            scratch.append(pltpu.VMEM((gk, tm_e, tk_e), dtype))
            kernel = functools.partial(
                _dropout_linear_kernel_cached, threshold=threshold, scale=scale,
                tm=tm_e, tk=tk_e, k_valid=k_valid)
        else:
            kernel = functools.partial(
                _dropout_linear_kernel, threshold=threshold, scale=scale,
                tm=tm_e, tk=tk_e, k_valid=k_valid)
        y2 = pl.pallas_call(
            kernel,
            out_shape=out_shape,
            grid_spec=pltpu.PrefetchScalarGridSpec(
                num_scalar_prefetch=1,               # seed lands in SMEM
                grid=grid,
                in_specs=[x_spec, w_spec, b_spec],
                out_specs=o_spec,
                scratch_shapes=scratch),
            compiler_params=cparams,
        )(seed_arr, x2, w2, b2)

    return y2[:, :Dout].reshape(B, S, Dout)


# --------------------------------- demo -------------------------------------- #

if __name__ == "__main__":
    p = 0.5

    # --- Case 1: eval mode (dropout == identity), tiny shapes ----------------
    B, S, Din, Dout = 2, 8, 32, 16
    k1, k2, k3 = jax.random.split(jax.random.PRNGKey(0), 3)
    x = jax.random.normal(k1, (B, S, Din), dtype=jnp.float32)
    w_torch = jax.random.normal(k2, (Dout, Din), dtype=jnp.float32) / jnp.sqrt(Din)
    w = w_torch.T                               # (Din, Dout); torch stores (out, in)
    b = jax.random.normal(k3, (Dout,), dtype=jnp.float32) * 0.01

    y = jax.block_until_ready(contrastive_ot_forward(x, w, b, p=p, training=False))
    y_ref = jnp.einsum("bsd,do->bso", x, w, precision=lax.Precision.HIGHEST) + b
    assert y.shape == (B, S, Dout)
    assert jnp.allclose(y, y_ref, atol=1e-3, rtol=1e-3), "eval-mode mismatch"

    # --- Case 2: training mode; shapes chosen so the masked-x VMEM cache, the
    #     K-tail masking and the >=2-N-blocks split are all exercised ---------
    B2, S2, Din2, Dout2, seed = 2, 8, 384, 256, 123
    k4, k5, k6 = jax.random.split(jax.random.PRNGKey(1), 3)
    xt = jax.random.normal(k4, (B2, S2, Din2), dtype=jnp.float32)
    wt = (jax.random.normal(k5, (Dout2, Din2), dtype=jnp.float32) / jnp.sqrt(Din2)).T
    bt = jax.random.normal(k6, (Dout2,), dtype=jnp.float32) * 0.01

    y_tr = jax.block_until_ready(
        contrastive_ot_forward(xt, wt, bt, p=p, training=True, seed=seed))
    assert y_tr.shape == (B2, S2, Dout2)
    assert bool(jnp.all(jnp.isfinite(y_tr)))

    # Host-side reference using the same counter-based keep mask.
    threshold = min(int(round(p * float(1 << 32))), (1 << 32) - 1)
    scale = 1.0 / (1.0 - p)
    keep = _keep_mask((B2 * S2, Din2), 0, 0, jnp.int32(seed), threshold)
    xm = jnp.where(keep, xt.reshape(B2 * S2, Din2), 0.0)
    y_tr_ref = (jnp.dot(xm, wt, precision=lax.Precision.HIGHEST) * scale
                + bt).reshape(B2, S2, Dout2)
    assert jnp.allclose(y_tr, y_tr_ref, atol=1e-3, rtol=1e-3), "training-mode mismatch"

    # Sanity: roughly half the activations were kept.
    keep_frac = float(jnp.mean(keep.astype(jnp.float32)))
    assert 0.4 < keep_frac < 0.6, keep_frac

    print("KERNEL_OK")
</pallas_src>

<mosaic_0001>
module attributes {stable_mosaic.version = 11 : i64} {
  func.func @_linear_kernel(%arg0: i32, %arg1: i32, %arg2: i32, %arg3: memref<16x128xf32, #tpu.memory_space<vmem>>, %arg4: memref<128x128xf32, #tpu.memory_space<vmem>>, %arg5: memref<1x128xf32, #tpu.memory_space<vmem>>, %arg6: memref<16x128xf32, #tpu.memory_space<vmem>>, %arg7: memref<16x128xf32, #tpu.memory_space<vmem>>) attributes {dimension_semantics = [#tpu.dimension_semantics<parallel>, #tpu.dimension_semantics<parallel>, #tpu.dimension_semantics<arbitrary>], iteration_bounds = array<i64: 1, 1, 1>, scalar_prefetch = 0 : i64, scratch_operands = 1 : i64, tpu.core_type = #tpu.core_type<tc>, window_params = [{transform_indices = @transform_0, window_bounds = array<i64: 16, 128>}, {transform_indices = @transform_1, window_bounds = array<i64: 128, 128>}, {transform_indices = @transform_2, window_bounds = array<i64: 1, 128>}, {transform_indices = @transform_3, window_bounds = array<i64: 16, 128>}]} {
    %c0_i32 = arith.constant 0 : i32
    %0 = arith.cmpi eq, %arg2, %c0_i32 : i32
    %1 = arith.extui %0 : i1 to i32
    %c0_i32_0 = arith.constant 0 : i32
    %2 = arith.cmpi ne, %1, %c0_i32_0 : i32
    scf.if %2 {
      %cst_11 = arith.constant 0.000000e+00 : f32
      %20 = vector.broadcast %cst_11 : f32 to vector<16x128xf32>
      %c0_12 = arith.constant 0 : index
      %c0_13 = arith.constant 0 : index
      %21 = vector.load %arg7[%c0_12, %c0_13] : memref<16x128xf32, #tpu.memory_space<vmem>>, vector<16x128xf32>
      tpu.vector_store %arg7[%c0_12, %c0_13], %20 {strides = array<i32>} : memref<16x128xf32, #tpu.memory_space<vmem>>, vector<16x128xf32>,
    } else {
    }
    %c0 = arith.constant 0 : index
    %c0_1 = arith.constant 0 : index
    %3 = vector.load %arg3[%c0, %c0_1] : memref<16x128xf32, #tpu.memory_space<vmem>>, vector<16x128xf32>
    %c128_i32 = arith.constant 128 : i32
    %4 = arith.muli %arg2, %c128_i32 : i32
    %5 = tpu.iota {dimensions = array<i32: 1>} : vector<16x128xi32>
    %6 = vector.broadcast %4 : i32 to vector<16x128xi32>
    %7 = arith.addi %6, %5 : vector<16x128xi32>
    %c32_i32 = arith.constant 32 : i32
    %8 = vector.broadcast %c32_i32 : i32 to vector<16x128xi32>
    %9 = arith.cmpi slt, %7, %8 : vector<16x128xi32>
    %cst = arith.constant 0.000000e+00 : f32
    %10 = vector.broadcast %cst : f32 to vector<16x128xf32>
    %11 = arith.select %9, %3, %10 : vector<16x128xi1>, vector<16x128xf32>
    %c0_2 = arith.constant 0 : index
    %c0_3 = arith.constant 0 : index
    %12 = vector.load %arg7[%c0_2, %c0_3] : memref<16x128xf32, #tpu.memory_space<vmem>>, vector<16x128xf32>
    %c0_4 = arith.constant 0 : index
    %c0_5 = arith.constant 0 : index
    %13 = vector.load %arg4[%c0_4, %c0_5] : memref<128x128xf32, #tpu.memory_space<vmem>>, vector<128x128xf32>
    %cst_6 = arith.constant dense<0.000000e+00> : vector<16x128xf32>
    %14 = tpu.matmul %11, %13, %cst_6 {dimension_numbers = #tpu.dot_dimension_numbers<[1], [0], [0], [1], [0, 0, 1, 1], [], []>} : vector<16x128xf32>, vector<128x128xf32>, vector<16x128xf32> -> vector<16x128xf32>
    %15 = arith.addf %12, %14 : vector<16x128xf32>
    %c0_7 = arith.constant 0 : index
    %c0_8 = arith.constant 0 : index
    %16 = vector.load %arg7[%c0_7, %c0_8] : memref<16x128xf32, #tpu.memory_space<vmem>>, vector<16x128xf32>
    tpu.vector_store %arg7[%c0_7, %c0_8], %15 {strides = array<i32>} : memref<16x128xf32, #tpu.memory_space<vmem>>, vector<16x128xf32>,
    %c0_i32_9 = arith.constant 0 : i32
    %17 = arith.cmpi eq, %arg2, %c0_i32_9 : i32
    %18 = arith.extui %17 : i1 to i32
    %c0_i32_10 = arith.constant 0 : i32
    %19 = arith.cmpi ne, %18, %c0_i32_10 : i32
    scf.if %19 {
      %c0_11 = arith.constant 0 : index
      %c0_12 = arith.constant 0 : index
      %20 = vector.load %arg7[%c0_11, %c0_12] : memref<16x128xf32, #tpu.memory_space<vmem>>, vector<16x128xf32>
      %c0_13 = arith.constant 0 : index
      %c0_14 = arith.constant 0 : index
      %21 = vector.load %arg5[%c0_13, %c0_14] : memref<1x128xf32, #tpu.memory_space<vmem>>, vector<1x128xf32>
      %22 = vector.broadcast %21 : vector<1x128xf32> to vector<16x128xf32>
      %23 = arith.addf %20, %22 : vector<16x128xf32>
      %c0_15 = arith.constant 0 : index
      %c0_16 = arith.constant 0 : index
      %24 = vector.load %arg6[%c0_15, %c0_16] : memref<16x128xf32, #tpu.memory_space<vmem>>, vector<16x128xf32>
      tpu.vector_store %arg6[%c0_15, %c0_16], %23 {strides = array<i32>} : memref<16x128xf32, #tpu.memory_space<vmem>>, vector<16x128xf32>,
    } else {
    }
    return
  }
  func.func @transform_0(%arg0: i32, %arg1: i32, %arg2: i32) -> (i32, i32) {
    %c0_i32 = arith.constant 0 : i32
    return %arg0, %arg2 : i32, i32
  }
  func.func @transform_1(%arg0: i32, %arg1: i32, %arg2: i32) -> (i32, i32) {
    %c0_i32 = arith.constant 0 : i32
    return %arg2, %arg1 : i32, i32
  }
  func.func @transform_2(%arg0: i32, %arg1: i32, %arg2: i32) -> (i32, i32) {
    %c0_i32 = arith.constant 0 : i32
    %c0_i32_0 = arith.constant 0 : i32
    return %c0_i32, %arg1 : i32, i32
  }
  func.func @transform_3(%arg0: i32, %arg1: i32, %arg2: i32) -> (i32, i32) {
    %c0_i32 = arith.constant 0 : i32
    return %arg0, %arg1 : i32, i32
  }
}

</mosaic_0001>

<llo_original>
// kernel: tpu_custom_call.1
$region0: #{tpu_custom_call.1}
  #allocation0 [shape = 'u32[]', space=smem, size = 0x4, offset = 0x4, fixed_abs, tag = 'smem constant byte address 0x4 - core index']
  #allocation1 [shape = 'u32[72,128]{1,0:T(1,128)}', space=vmem, size = 0x9000, scoped, tag = 'internal scratch']
  #allocation2 [shape = 'f32[16,128]{1,0:T(8,128)}', space=vmem, size = 0x2000, scoped, tag = 'scratch operand']
  %s0 = inlined_call_operand.hbm [shape: f32[16,32], index: 0, kind: input, shape index: {}]
  %s1 = inlined_call_operand.hbm [shape: f32[128,128], index: 1, kind: input, shape index: {}]
  %s2 = inlined_call_operand.vmem [shape: f32[1,128], index: 2, kind: input, shape index: {}]
  %s3 = inlined_call_operand.hbm [shape: f32[16,128], index: 3, kind: output, shape index: {}]
  %s4 = sld [smem:[#allocation0]]
  $region38: #{tpu_custom_call.1} parent=0
    _
  %s6 = ssub.s32 1, %s4
  %s7 = scalar_select 0, %s6, %s4
  $region1: #{tpu_custom_call.1} parent=0
    #allocation3 [shape = 'u8[8192]{0}', space=vmem, size = 0x2000, scoped, tag = 'input window, operand 0, single buffered']
    #allocation4 [shape = 's32[1]{0}', space=sflag, size = 0x4, scoped, tag = 'scoped memory for tpu_custom_call.1']
    #allocation5 [shape = 's32[1]{0}', space=sflag, size = 0x4, scoped, tag = 'scoped memory for tpu_custom_call.1']
    #allocation6 [shape = 'u8[65536]{0}', space=vmem, size = 0x10000, scoped, tag = 'input window, operand 1, single buffered']
    #allocation7 [shape = 's32[1]{0}', space=sflag, size = 0x4, scoped, tag = 'scoped memory for tpu_custom_call.1']
    #allocation8 [shape = 'u8[8192]{0}', space=vmem, size = 0x2000, scoped, tag = 'output window, operand 0, single buffered']
    %8 = vsyncpa [#allocation4], 0
    %9 = vsyncpa [#allocation7], 0
    %10 = vsyncpa [#allocation5], 0
    // Predicated region
    $region2: #{tpu_custom_call.1} parent=1 // pred_check
      _
    $region3: #{tpu_custom_call.1} parent=1 // pred_check_branch
      %12 = sbr.rel (0) target = $region5
    $region4: #{tpu_custom_call.1} parent=1 // pred_region
      %14 = vsyncadd [#allocation4], 0
      %s15 = sshll.u32 %s0, 4
      %s16 = int_to_ptr.hbm [resolvable:$true] %s15
      %s17 = sshll.u32 [#allocation3], 4
      %s18 = int_to_ptr.vmem [resolvable:$true] %s17
      %23 = dma.hbm_to_vmem [thread:$0]  %s16, 256, %s18, [#allocation4], 128, 128, 8
    $region5: #{tpu_custom_call.1} parent=1 // pred_fallthru
      _
    // Predicated region
    $region6: #{tpu_custom_call.1} parent=1 // pred_check
      _
    $region7: #{tpu_custom_call.1} parent=1 // pred_check_branch
      %25 = sbr.rel (0) target = $region9
    $region8: #{tpu_custom_call.1} parent=1 // pred_region
      %27 = vsyncadd [#allocation7], 0
      %s28 = sshll.u32 %s1, 4
      %s29 = int_to_ptr.hbm [resolvable:$true] %s28
      %s30 = sshll.u32 [#allocation6], 4
      %s31 = int_to_ptr.vmem [resolvable:$true] %s30
      %36 = dma.hbm_to_vmem [thread:$0]  %s29, 2048, %s31, [#allocation7], 128, 128, 8
    $region9: #{tpu_custom_call.1} parent=1 // pred_fallthru
      _
    // Predicated region
    $region10: #{tpu_custom_call.1} parent=1 // pred_check
      _
    $region11: #{tpu_custom_call.1} parent=1 // pred_check_branch
      %38 = sbr.rel (0) target = $region13
    $region12: #{tpu_custom_call.1} parent=1 // pred_region
      _
    $region13: #{tpu_custom_call.1} parent=1 // pred_fallthru
      _
    // Predicated region
    $region14: #{tpu_custom_call.1} parent=1 // pred_check
      _
    $region15: #{tpu_custom_call.1} parent=1 // pred_check_branch
      %40 = sbr.rel (0) target = $region17
    $region16: #{tpu_custom_call.1} parent=1 // pred_region
      %42 = dma.done [#allocation4], 256
    $region17: #{tpu_custom_call.1} parent=1 // pred_fallthru
      _
    // Predicated region
    $region18: #{tpu_custom_call.1} parent=1 // pred_check
      _
    $region19: #{tpu_custom_call.1} parent=1 // pred_check_branch
      %44 = sbr.rel (0) target = $region21
    $region20: #{tpu_custom_call.1} parent=1 // pred_region
      %46 = dma.done [#allocation7], 2048
    $region21: #{tpu_custom_call.1} parent=1 // pred_fallthru
      _
    %p47 = scmp.eq.s32.totalorder 0, 0
    // Predicated region
    $region22: #{tpu_custom_call.1} parent=1 // pred_check
      %p48 = pneg %p47
    $region23: #{tpu_custom_call.1} parent=1 // pred_check_branch
      %50 = sbr.rel (%p48) target = $region25
    $region24: #{tpu_custom_call.1} parent=1 // pred_region
      %51 = vst [vmem:[#allocation2] sm:$0xff] 0.0
      %52 = vst [vmem:[#allocation2 + $0x8] sm:$0xff] 0.0
    $region25: #{tpu_custom_call.1} parent=1 // pred_fallthru
      _
    %v53 = vld [vmem:[#allocation3] sm:$0xff]
    %v54 = vld [vmem:[#allocation3 + $0x8] sm:$0xff]
    %s55 = smul.u32 0, 128
    %v56 = vlaneseq
    %v57 = vand.u32 %v56, 127
    %v58 = vstv %s55
    %v59 = vadd.s32 %v58, %v57
    %vm60 = vcmp.lt.s32.totalorder %v59, 32
    %v61 = vsel %vm60, %v53, 0.0
    %v62 = vsel %vm60, %v54, 0.0
    %v63 = vld [vmem:[#allocation2] sm:$0xff]
    %v64 = vld [vmem:[#allocation2 + $0x8] sm:$0xff]
    %v65 = vld [vmem:[#allocation6] sm:$0xff]
    %v66 = vld [vmem:[#allocation6 + $0x8] sm:$0xff]
    %v67 = vld [vmem:[#allocation6 + $0x10] sm:$0xff]
    %v68 = vld [vmem:[#allocation6 + $0x18] sm:$0xff]
    %v69 = vld [vmem:[#allocation6 + $0x20] sm:$0xff]
    %v70 = vld [vmem:[#allocation6 + $0x28] sm:$0xff]
    %v71 = vld [vmem:[#allocation6 + $0x30] sm:$0xff]
    %v72 = vld [vmem:[#allocation6 + $0x38] sm:$0xff]
    %v73 = vld [vmem:[#allocation6 + $0x40] sm:$0xff]
    %v74 = vld [vmem:[#allocation6 + $0x48] sm:$0xff]
    %v75 = vld [vmem:[#allocation6 + $0x50] sm:$0xff]
    %v76 = vld [vmem:[#allocation6 + $0x58] sm:$0xff]
    %v77 = vld [vmem:[#allocation6 + $0x60] sm:$0xff]
    %v78 = vld [vmem:[#allocation6 + $0x68] sm:$0xff]
    %v79 = vld [vmem:[#allocation6 + $0x70] sm:$0xff]
    %v80 = vld [vmem:[#allocation6 + $0x78] sm:$0xff]
    %81 = vmatpush.msra.mxu0 %v80
    %82 = vmatpush.msra.mxu0 %v79
    %83 = vmatpush.msra.mxu0 %v78
    %84 = vmatpush.msra.mxu0 %v77
    %85 = vmatpush.msra.mxu0 %v76
    %86 = vmatpush.msra.mxu0 %v75
    %87 = vmatpush.msra.mxu0 %v74
    %88 = vmatpush.msra.mxu0 %v73
    %89 = vmatpush.msra.mxu0 %v72
    %90 = vmatpush.msra.mxu0 %v71
    %91 = vmatpush.msra.mxu0 %v70
    %92 = vmatpush.msra.mxu0 %v69
    %93 = vmatpush.msra.mxu0 %v68
    %94 = vmatpush.msra.mxu0 %v67
    %95 = vmatpush.msra.mxu0 %v66
    %96 = vmatpush.msra.mxu0 %v65
    %97 = vmatmul.f32.gmra.mxu0 %v61
    %v98 = vpop.f32.mrf.mxu0
    %v99 = vadd.f32 0.0, %v98
    %100 = vmatmul.f32.gmra.mxu0 %v62
    %v101 = vpop.f32.mrf.mxu0
    %v102 = vadd.f32 0.0, %v101
    %103 = vdwg.mxu0
    %v104 = vadd.f32 %v63, %v99
    %v105 = vadd.f32 %v64, %v102
    %106 = vst [vmem:[#allocation2] sm:$0xff] %v104
    %107 = vst [vmem:[#allocation2 + $0x8] sm:$0xff] %v105
    // Predicated region
    $region26: #{tpu_custom_call.1} parent=1 // pred_check
      %p108 = pneg %p47
    $region27: #{tpu_custom_call.1} parent=1 // pred_check_branch
      %110 = sbr.rel (%p108) target = $region29
    $region28: #{tpu_custom_call.1} parent=1 // pred_region
      %v111 = vld [vmem:[#allocation2] sm:$0xff]
      %v112 = vld [vmem:[#allocation2 + $0x8] sm:$0xff]
      %v113 = vld [vmem:[%s2] sm:$0x1]
      %v115 = vperm.slane %v113, 0
      %v117 = vadd.f32 %v111, %v115
      %v118 = vadd.f32 %v112, %v115
      %119 = vst [vmem:[#allocation8] sm:$0xff] %v117
      %120 = vst [vmem:[#allocation8 + $0x8] sm:$0xff] %v118
    $region29: #{tpu_custom_call.1} parent=1 // pred_fallthru
      _
    // Predicated region
    $region30: #{tpu_custom_call.1} parent=1 // pred_check
      _
    $region31: #{tpu_custom_call.1} parent=1 // pred_check_branch
      %122 = sbr.rel (0) target = $region33
    $region32: #{tpu_custom_call.1} parent=1 // pred_region
      %124 = vsyncadd [#allocation5], 0
      %s125 = sshll.u32 [#allocation8], 4
      %s126 = int_to_ptr.vmem [resolvable:$true] %s125
      %s127 = sshll.u32 %s3, 4
      %s128 = int_to_ptr.hbm [resolvable:$true] %s127
      %133 = dma.vmem_to_hbm [thread:$0]  %s126, 256, %s128, [#allocation5], 128, 128, 8
    $region33: #{tpu_custom_call.1} parent=1 // pred_fallthru
      _
    // Predicated region
    $region34: #{tpu_custom_call.1} parent=1 // pred_check
      _
    $region35: #{tpu_custom_call.1} parent=1 // pred_check_branch
      %135 = sbr.rel (0) target = $region37
    $region36: #{tpu_custom_call.1} parent=1 // pred_region
      %137 = dma.done [#allocation5], 256
    $region37: #{tpu_custom_call.1} parent=1 // pred_fallthru
      _
    %138 = vsyncpa [#allocation4], 1
    %139 = vsyncpa [#allocation7], 1
    %140 = vsyncpa [#allocation5], 1

</llo_original>
